<compile_context>
chip_gen: v5e
topology: v5e:2x2
jax: 0.10.0
libtpu: 0.0.40
codegen_flags: <defaults>
</compile_context>

<pallas_src>
import jax
import jax.numpy as jnp
from jax.experimental import pallas as pl
from jax.experimental.pallas import tpu as pltpu


def _lstm_cell_kernel(g_ref, w_ref, b_ref, comb_ref, cpre_ref, hc_ref):
    # g_ref:    [N, K*N]   MXU dtype; g_ref[n, j*K + k] == G[k, n, j]
    # w_ref:    [D, K*4H]  MXU dtype; lane block k holds W_k = W[k*D:(k+1)*D, :]
    #                      (g-gate columns pre-scaled by 2 for tanh-via-sigmoid)
    # b_ref:    [1, 4H]    f32 (g-gate slice pre-scaled by 2)
    # comb_ref: [TB*N, D]  MXU dtype; row t*N + n = concat(x_t, h_pre)[b0+t, n]
    # cpre_ref: [TB*N, H]  f32
    # hc_ref:   [TB*N, 2H] f32 out; [:, :H] = h_t, [:, H:] = c_t
    N = g_ref.shape[0]
    M = comb_ref.shape[0]
    H = cpre_ref.shape[1]
    H4 = 4 * H
    K = w_ref.shape[1] // H4
    TB = M // N

    g_il = g_ref[...]                         # [N, K*N]   (shared)
    w = w_ref[...]                            # [D, K*4H]  (shared)
    bias = b_ref[...]                         # [1, 4H]

    # Stream per sample: keeps the [N, K*4H] projection intermediate small, so
    # there is never a full-tile f32 + low-precision duplicate live at once.
    for t in range(TB):                       # TB is small & static -> unrolled
        r0 = t * N
        comb_t = comb_ref[pl.ds(r0, N), :]                                  # [N, D]

        # Projection against all K weight blocks at once (contraction D).
        # Output directly in the MXU dtype: single rounding on the bf16 path.
        z_t = jnp.dot(comb_t, w, preferred_element_type=w.dtype)           # [N, K*4H]

        # Row-major regroup [N, K*4H] -> [N*K, 4H]; with 4H == 128 this never
        # crosses a lane group.  Row j*K + k holds (comb_t @ W_k)[j, :].
        z_stack = z_t.reshape(N * K, H4)

        # ONE fused graph-support matmul (contraction K*N) replaces K tiny
        # contraction-N dots:  gates_t = sum_k G[k] @ (comb_t @ W_k) + b.
        gates_t = jnp.dot(g_il, z_stack,
                          preferred_element_type=jnp.float32) + bias       # [N, 4H]

        # Single sigmoid pass over the full 4H-wide block (whole vregs); the
        # g-gate tanh is recovered as 2*sigmoid(2x) - 1 (W/b pre-scaled by 2).
        sg = jax.nn.sigmoid(gates_t)
        i = sg[:, 0 * H:1 * H]
        f = sg[:, 1 * H:2 * H]
        o = sg[:, 2 * H:3 * H]
        g = 2.0 * sg[:, 3 * H:4 * H] - 1.0

        c_prev = cpre_ref[pl.ds(r0, N), :]
        c_t = f * c_prev + i * g
        h_t = o * jnp.tanh(c_t)

        # Packed h|c store (2H lanes; already 2x denser than separate h, c).
        hc_ref[pl.ds(r0, N), :] = jnp.concatenate(
            [h_t, c_t], axis=-1).astype(hc_ref.dtype)


def lstm_cell_forward(G, W, b, x_t, h_pre, c_pre, *, tb=None,
                      mxu_dtype=jnp.float32):
    """Pallas TPU forward of LSTM_Cell (GCN-gated LSTM cell).

    G:   [K, N, N] float32        W: [K*(C+H), 4H] float32     b: [4H] float32
    x_t: [B, N, C] float32        h_pre / c_pre: [B, N, H] float32
    Returns (h_t, c_t), each [B, N, H] float32.

    mxu_dtype: dtype fed to the MXU for G / W / combined.  bfloat16 is
    recommended on ALL generations (v5e's MXU is bf16-native so f32 takes the
    slow multi-pass path; on v6e/v7x it halves DMA bytes & VMEM).  Accumulation
    and the element-wise gating stay in float32.  Casting G to bf16 can lose
    precision if the graph supports have wide dynamic range.

    Layout assumptions (correctness never depends on them, only speed):
      * N % 8 == 0 keeps per-sample row slices sublane-aligned (otherwise we
        fall back to a single full-array block).
      * 4H % 128 == 0 (e.g. H = 32) makes the per-k projection slices and the
        [N, K*4H] -> [N*K, 4H] regroup lane-aligned.
    """
    B, N, C = x_t.shape
    H = h_pre.shape[-1]
    K = G.shape[0]
    D = C + H
    assert W.shape == (K * D, 4 * H)
    assert b.shape == (4 * H,)

    # ---- batch-tile selection ----
    if tb is None:
        # Target ~256 MXU rows per tile, cap the static unroll at 16 samples,
        # and keep nb >= 2 whenever B >= 2 so the "parallel" grid axis can be
        # split across both v7x TensorCores (free on v5e/v6e).
        tb = max(1, min(max(1, 256 // N), 16, B))
        if B >= 2:
            tb = min(tb, max(1, B // 2))
    if N % 8 != 0:
        tb = B                     # full-array block: always layout-legal
    tb = max(1, min(tb, B))
    nb = -(-B // tb)               # ceil(B / tb)
    B_pad = nb * tb                # pad batch if tb does not divide B

    # ---- layout prep (plain XLA, outside the kernel) ----
    combined = jnp.concatenate([x_t, h_pre], axis=-1)              # [B, N, D]
    comb_flat = combined.reshape(B * N, D).astype(mxu_dtype)       # row = b*N+n
    cpre_flat = c_pre.reshape(B * N, H).astype(jnp.float32)
    if B_pad != B:
        pad_rows = (B_pad - B) * N
        comb_flat = jnp.concatenate(
            [comb_flat, jnp.zeros((pad_rows, D), comb_flat.dtype)], axis=0)
        cpre_flat = jnp.concatenate(
            [cpre_flat, jnp.zeros((pad_rows, H), cpre_flat.dtype)], axis=0)

    # tanh(x) = 2*sigmoid(2x) - 1: pre-scale the g-gate columns of W and b by 2
    # so the kernel needs only one sigmoid pass over the whole 4H gate block.
    gate_scale = jnp.concatenate(
        [jnp.ones((3 * H,), jnp.float32), jnp.full((H,), 2.0, jnp.float32)])
    W_s = W * gate_scale[None, :]
    b_s = b * gate_scale

    # W[k*D + d, q] -> w_wide[d, k*4H + q]: lane-dense shared weight layout.
    w_wide = (W_s.reshape(K, D, 4 * H)
                 .transpose(1, 0, 2)
                 .reshape(D, K * 4 * H)
                 .astype(mxu_dtype))
    # G[k, n, j] -> g_il[n, j*K + k]: one [N, K*N] operand so the kernel applies
    # all K supports with a single contraction-(K*N) matmul per sample (and the
    # [K, N, N] layout with its 128-lane padding of the last dim is avoided).
    g_il = G.transpose(1, 2, 0).reshape(N, K * N).astype(mxu_dtype)
    b2 = b_s.reshape(1, 4 * H).astype(jnp.float32)

    # ---- size-derived VMEM limit (double-buffered blocks + headroom) ----
    itemsize = jnp.dtype(mxu_dtype).itemsize
    block_bytes = (
        2 * (g_il.size + w_wide.size) * itemsize
        + 2 * b2.size * 4
        + 2 * tb * N * D * itemsize          # combined tile
        + 2 * tb * N * H * 4                 # c_pre tile
        + 2 * tb * N * 2 * H * 4             # packed h|c tile
    )
    vmem_limit_bytes = int(min(max(2 * block_bytes, 4 * 1024 * 1024),
                               32 * 1024 * 1024))

    # ---- advisory cost estimate (matches what the kernel actually does) ----
    flops = (2 * B_pad * N * D * (K * 4 * H)           # projection
             + 2 * B_pad * N * (K * N) * (4 * H))      # graph supports
    transcendentals = B_pad * N * 5 * H                # sigmoid(4H) + tanh(H)
    bytes_accessed = ((g_il.size + w_wide.size + comb_flat.size) * itemsize
                      + (b2.size + cpre_flat.size) * 4
                      + B_pad * N * 2 * H * 4)

    grid_spec = pltpu.PrefetchScalarGridSpec(
        num_scalar_prefetch=0,
        grid=(nb,),
        in_specs=[
            pl.BlockSpec((N, K * N), lambda bb: (0, 0)),           # G (shared)
            pl.BlockSpec((D, K * 4 * H), lambda bb: (0, 0)),       # W (shared)
            pl.BlockSpec((1, 4 * H), lambda bb: (0, 0)),           # bias (shared)
            pl.BlockSpec((tb * N, D), lambda bb: (bb, 0)),         # combined tile
            pl.BlockSpec((tb * N, H), lambda bb: (bb, 0)),         # c_pre tile
        ],
        out_specs=pl.BlockSpec((tb * N, 2 * H), lambda bb: (bb, 0)),  # packed h|c
    )

    hc = pl.pallas_call(
        _lstm_cell_kernel,
        out_shape=jax.ShapeDtypeStruct((B_pad * N, 2 * H), jnp.float32),
        grid_spec=grid_spec,
        compiler_params=pltpu.CompilerParams(
            dimension_semantics=("parallel",),
            vmem_limit_bytes=vmem_limit_bytes,
        ),
        cost_estimate=pl.CostEstimate(
            flops=int(flops),
            transcendentals=int(transcendentals),
            bytes_accessed=int(bytes_accessed)),
    )(g_il, w_wide, b2, comb_flat, cpre_flat)

    hc = hc[:B * N]
    h_t = hc[:, :H].reshape(B, N, H)
    c_t = hc[:, H:].reshape(B, N, H)
    return h_t, c_t


def lstm_cell_reference(G, W, b, x_t, h_pre, c_pre):
    """Pure-JAX reference matching the PyTorch module semantics."""
    combined = jnp.concatenate([x_t, h_pre], axis=-1)               # [B,N,D]
    supports = [jnp.einsum('ij,bjp->bip', G[k], combined) for k in range(G.shape[0])]
    support_cat = jnp.concatenate(supports, axis=-1)                # [B,N,K*D]
    gates = jnp.einsum('bip,pq->biq', support_cat, W) + b           # [B,N,4H]
    H = h_pre.shape[-1]
    gi, gf, go, gg = (gates[..., 0:H], gates[..., H:2 * H],
                      gates[..., 2 * H:3 * H], gates[..., 3 * H:4 * H])
    i = jax.nn.sigmoid(gi)
    f = jax.nn.sigmoid(gf)
    o = jax.nn.sigmoid(go)
    g = jnp.tanh(gg)
    c_t = f * c_pre + i * g
    h_t = o * jnp.tanh(c_t)
    return h_t, c_t


if __name__ == "__main__":
    # Small, module-consistent shapes.
    B, N, C, H, K = 2, 16, 4, 32, 3
    D = C + H

    key = jax.random.PRNGKey(0)
    kG, kW, kx, kh, kc = jax.random.split(key, 5)

    # Deterministic parameter init (mirrors nn.init.xavier_normal_ / constant_).
    fan_in, fan_out = K * D, 4 * H
    xavier_std = (2.0 / (fan_in + fan_out)) ** 0.5
    W = xavier_std * jax.random.normal(kW, (K * D, 4 * H), dtype=jnp.float32)
    b = jnp.zeros((4 * H,), dtype=jnp.float32)

    # Deterministic inputs.
    G = jax.random.normal(kG, (K, N, N), dtype=jnp.float32) / jnp.sqrt(N)
    x_t = jax.random.normal(kx, (B, N, C), dtype=jnp.float32)
    h_pre = jax.random.normal(kh, (B, N, H), dtype=jnp.float32)
    c_pre = jax.random.normal(kc, (B, N, H), dtype=jnp.float32)

    h_ref, c_ref = lstm_cell_reference(G, W, b, x_t, h_pre, c_pre)

    # Exact path: f32 MXU inputs (tight correctness check).
    h32, c32 = lstm_cell_forward(G, W, b, x_t, h_pre, c_pre,
                                 mxu_dtype=jnp.float32)
    jax.block_until_ready((h32, c32))
    assert jnp.allclose(h32, h_ref, atol=1e-4, rtol=1e-4), "h_t mismatch (f32)"
    assert jnp.allclose(c32, c_ref, atol=1e-4, rtol=1e-4), "c_t mismatch (f32)"

    # Fast path: bf16 MXU inputs, f32 accumulation/gating (recommended on all
    # TPU generations; single bf16 rounding on the projection output).
    hbf, cbf = lstm_cell_forward(G, W, b, x_t, h_pre, c_pre,
                                 mxu_dtype=jnp.bfloat16)
    jax.block_until_ready((hbf, cbf))
    assert jnp.allclose(hbf, h_ref, atol=6e-2, rtol=5e-2), "h_t mismatch (bf16)"
    assert jnp.allclose(cbf, c_ref, atol=6e-2, rtol=5e-2), "c_t mismatch (bf16)"

    print("KERNEL_OK")
</pallas_src>

<mosaic_0001>
module attributes {stable_mosaic.version = 11 : i64} {
  func.func @_lstm_cell_kernel(%arg0: i32, %arg1: memref<16x48xf32, #tpu.memory_space<vmem>>, %arg2: memref<36x384xf32, #tpu.memory_space<vmem>>, %arg3: memref<1x128xf32, #tpu.memory_space<vmem>>, %arg4: memref<16x36xf32, #tpu.memory_space<vmem>>, %arg5: memref<16x32xf32, #tpu.memory_space<vmem>>, %arg6: memref<16x64xf32, #tpu.memory_space<vmem>>) attributes {dimension_semantics = [#tpu.dimension_semantics<parallel>], iteration_bounds = array<i64: 2>, scalar_prefetch = 0 : i64, scratch_operands = 0 : i64, tpu.core_type = #tpu.core_type<tc>, window_params = [{pipeline_mode = #tpu.pipeline_mode<synchronous>, transform_indices = @transform_0, window_bounds = array<i64: 16, 48>}, {pipeline_mode = #tpu.pipeline_mode<synchronous>, transform_indices = @transform_1, window_bounds = array<i64: 36, 384>}, {pipeline_mode = #tpu.pipeline_mode<synchronous>, transform_indices = @transform_2, window_bounds = array<i64: 1, 128>}, {transform_indices = @transform_3, window_bounds = array<i64: 16, 36>}, {transform_indices = @transform_4, window_bounds = array<i64: 16, 32>}, {transform_indices = @transform_5, window_bounds = array<i64: 16, 64>}]} {
    %c0 = arith.constant 0 : index
    %c0_0 = arith.constant 0 : index
    %0 = vector.load %arg1[%c0, %c0_0] : memref<16x48xf32, #tpu.memory_space<vmem>>, vector<16x48xf32>
    %c0_1 = arith.constant 0 : index
    %c0_2 = arith.constant 0 : index
    %1 = vector.load %arg2[%c0_1, %c0_2] : memref<36x384xf32, #tpu.memory_space<vmem>>, vector<36x384xf32>
    %c0_3 = arith.constant 0 : index
    %c0_4 = arith.constant 0 : index
    %2 = vector.load %arg3[%c0_3, %c0_4] : memref<1x128xf32, #tpu.memory_space<vmem>>, vector<1x128xf32>
    %c0_5 = arith.constant 0 : index
    %c0_6 = arith.constant 0 : index
    %3 = vector.load %arg4[%c0_5, %c0_6] : memref<16x36xf32, #tpu.memory_space<vmem>>, vector<16x36xf32>
    %cst = arith.constant dense<0.000000e+00> : vector<16x384xf32>
    %4 = tpu.matmul %3, %1, %cst {dimension_numbers = #tpu.dot_dimension_numbers<[1], [0], [0], [1], [0, 0, 1, 1], [], []>} : vector<16x36xf32>, vector<36x384xf32>, vector<16x384xf32> -> vector<16x384xf32>
    %5 = vector.shape_cast %4 : vector<16x384xf32> to vector<48x128xf32>
    %cst_7 = arith.constant dense<0.000000e+00> : vector<16x128xf32>
    %6 = tpu.matmul %0, %5, %cst_7 {dimension_numbers = #tpu.dot_dimension_numbers<[1], [0], [0], [1], [0, 0, 1, 1], [], []>} : vector<16x48xf32>, vector<48x128xf32>, vector<16x128xf32> -> vector<16x128xf32>
    %7 = vector.broadcast %2 : vector<1x128xf32> to vector<16x128xf32>
    %8 = arith.addf %6, %7 : vector<16x128xf32>
    %9 = arith.negf %8 : vector<16x128xf32>
    %10 = math.exp %9 : vector<16x128xf32>
    %cst_8 = arith.constant 1.000000e+00 : f32
    %11 = vector.broadcast %cst_8 : f32 to vector<16x128xf32>
    %12 = arith.addf %11, %10 : vector<16x128xf32>
    %13 = arith.divf %11, %12 : vector<16x128xf32>
    %14 = vector.extract_strided_slice %13 {offsets = [0, 0], sizes = [16, 32], strides = [1, 1]} : vector<16x128xf32> to vector<16x32xf32>
    %15 = vector.extract_strided_slice %13 {offsets = [0, 32], sizes = [16, 32], strides = [1, 1]} : vector<16x128xf32> to vector<16x32xf32>
    %16 = vector.extract_strided_slice %13 {offsets = [0, 64], sizes = [16, 32], strides = [1, 1]} : vector<16x128xf32> to vector<16x32xf32>
    %17 = vector.extract_strided_slice %13 {offsets = [0, 96], sizes = [16, 32], strides = [1, 1]} : vector<16x128xf32> to vector<16x32xf32>
    %cst_9 = arith.constant 2.000000e+00 : f32
    %18 = vector.broadcast %cst_9 : f32 to vector<16x32xf32>
    %19 = arith.mulf %18, %17 : vector<16x32xf32>
    %cst_10 = arith.constant 1.000000e+00 : f32
    %20 = vector.broadcast %cst_10 : f32 to vector<16x32xf32>
    %21 = arith.subf %19, %20 : vector<16x32xf32>
    %c0_11 = arith.constant 0 : index
    %c0_12 = arith.constant 0 : index
    %22 = vector.load %arg5[%c0_11, %c0_12] : memref<16x32xf32, #tpu.memory_space<vmem>>, vector<16x32xf32>
    %23 = arith.mulf %15, %22 : vector<16x32xf32>
    %24 = arith.mulf %14, %21 : vector<16x32xf32>
    %25 = arith.addf %23, %24 : vector<16x32xf32>
    %26 = math.tanh %25 : vector<16x32xf32>
    %27 = arith.mulf %16, %26 : vector<16x32xf32>
    %28 = tpu.concatenate %27, %25 in 1 : vector<16x32xf32>, vector<16x32xf32> -> vector<16x64xf32>
    %c0_13 = arith.constant 0 : index
    %c0_14 = arith.constant 0 : index
    %29 = vector.load %arg6[%c0_13, %c0_14] : memref<16x64xf32, #tpu.memory_space<vmem>>, vector<16x64xf32>
    tpu.vector_store %arg6[%c0_13, %c0_14], %28 {strides = array<i32>} : memref<16x64xf32, #tpu.memory_space<vmem>>, vector<16x64xf32>,
    return
  }
  func.func @transform_0(%arg0: i32) -> (i32, i32) {
    %c0_i32 = arith.constant 0 : i32
    %c0_i32_0 = arith.constant 0 : i32
    %c0_i32_1 = arith.constant 0 : i32
    return %c0_i32, %c0_i32_0 : i32, i32
  }
  func.func @transform_1(%arg0: i32) -> (i32, i32) {
    %c0_i32 = arith.constant 0 : i32
    %c0_i32_0 = arith.constant 0 : i32
    %c0_i32_1 = arith.constant 0 : i32
    return %c0_i32, %c0_i32_0 : i32, i32
  }
  func.func @transform_2(%arg0: i32) -> (i32, i32) {
    %c0_i32 = arith.constant 0 : i32
    %c0_i32_0 = arith.constant 0 : i32
    %c0_i32_1 = arith.constant 0 : i32
    return %c0_i32, %c0_i32_0 : i32, i32
  }
  func.func @transform_3(%arg0: i32) -> (i32, i32) {
    %c0_i32 = arith.constant 0 : i32
    %c0_i32_0 = arith.constant 0 : i32
    return %arg0, %c0_i32 : i32, i32
  }
  func.func @transform_4(%arg0: i32) -> (i32, i32) {
    %c0_i32 = arith.constant 0 : i32
    %c0_i32_0 = arith.constant 0 : i32
    return %arg0, %c0_i32 : i32, i32
  }
  func.func @transform_5(%arg0: i32) -> (i32, i32) {
    %c0_i32 = arith.constant 0 : i32
    %c0_i32_0 = arith.constant 0 : i32
    return %arg0, %c0_i32 : i32, i32
  }
}

</mosaic_0001>

<llo_original>
// kernel: tpu_custom_call.1
$region0: #{tpu_custom_call.1}
  #allocation0 [shape = 'u32[]', space=smem, size = 0x4, offset = 0x4, fixed_abs, tag = 'smem constant byte address 0x4 - core index']
  #allocation1 [shape = 'u32[72,128]{1,0:T(1,128)}', space=vmem, size = 0x9000, scoped, tag = 'internal scratch']
  %s0 = inlined_call_operand.hbm [shape: f32[16,48], index: 0, kind: input, shape index: {}]
  %s1 = inlined_call_operand.hbm [shape: f32[36,384], index: 1, kind: input, shape index: {}]
  %s2 = inlined_call_operand.vmem [shape: f32[1,128], index: 2, kind: input, shape index: {}]
  %s3 = inlined_call_operand.hbm [shape: f32[32,36], index: 3, kind: input, shape index: {}]
  %s4 = inlined_call_operand.hbm [shape: f32[32,32], index: 4, kind: input, shape index: {}]
  %s5 = inlined_call_operand.hbm [shape: f32[32,64], index: 5, kind: output, shape index: {}]
  %s6 = sld [smem:[#allocation0]]
  $region69: #{tpu_custom_call.1} parent=0
    _
  %s8 = ssub.s32 1, %s6
  %s9 = scalar_select 0, %s8, %s6
  $region1: #{tpu_custom_call.1} parent=0
    #allocation2 [shape = 'u8[8192]{0}', space=vmem, size = 0x2000, scoped, tag = 'input window, operand 0, single buffered']
    #allocation3 [shape = 's32[2]{0}', space=sflag, size = 0x8, scoped, tag = 'scoped memory for tpu_custom_call.1']
    #allocation4 [shape = 's32[2]{0}', space=sflag, size = 0x8, scoped, tag = 'scoped memory for tpu_custom_call.1']
    #allocation5 [shape = 'u8[61440]{0}', space=vmem, size = 0xf000, scoped, tag = 'input window, operand 1, single buffered']
    #allocation6 [shape = 's32[1]{0}', space=sflag, size = 0x4, scoped, tag = 'scoped memory for tpu_custom_call.1']
    #allocation7 [shape = 'u8[16384]{0}', space=vmem, size = 0x4000, scoped, tag = 'input window, operand 3']
    #allocation8 [shape = 'u8[16384]{0}', space=vmem, size = 0x4000, scoped, tag = 'input window, operand 4']
    #allocation9 [shape = 'u8[16384]{0}', space=vmem, size = 0x4000, scoped, tag = 'output window, operand 0']
    %10 = vsyncpa [#allocation3], 0
    %11 = vsyncpa [#allocation6], 0
    %12 = vsyncpa [#allocation4], 0
    %s13 = scalar_lea.sflag [#allocation4], 1
    %14 = vsyncpa %s13, 0
    loop: start=0, step=1, limit=4
    $region2: #{tpu_custom_call.1} parent=1 // loop_pre_header
      _
    $region3: #{tpu_custom_call.1} parent=1 // loop_header
      %s16 = sphi 0, %s20
      %p17 = scmp.ge.s32.totalorder %s16, 4
      %s24 = sphi 0, %s24
      %s26 = sphi 0, %s24
      %s27 = sphi 0, %s26
      %s41 = sphi 0, %s27
      %s45 = sphi 0, %s45
      %s47 = sphi 0, %s45
      %s48 = sphi 0, %s47
      %s62 = sphi 0, %s48
      %s66 = sphi 0, %s66
      %s68 = sphi 0, %s66
      %s69 = sphi 0, %s68
      %s83 = sphi 0, %s69
      %s89 = sphi 0, %s91
      %s92 = sphi 0, %s89
      %s93 = sphi 0, %s92
      %s109 = sphi 0, %s93
      %s115 = sphi 0, %s117
      %s118 = sphi 0, %s115
      %s119 = sphi 0, %s118
      %s135 = sphi 0, %s119
      %s141 = sphi 0, %s143
      %s144 = sphi 0, %s141
      %s145 = sphi 0, %s144
      %s161 = sphi 0, %s145
    $region4: #{tpu_custom_call.1} parent=1 // loop_header_branch
      %19 = sbr.rel (%p17) target = $region8
    $region5: #{tpu_custom_call.1} parent=1 // loop_body
      %s21 = ssub.s32 %s16, 1
      %s22 = ssub.s32 %s16, 2
      %s23 = sadd.s32 %s16, 1
      %s25 = sadd.s32 %s24, 1
      %p28 = scmp.eq.s32.totalorder %s16, 1
      %p29 = scmp.ne.s32.totalorder %s24, %s26
      %p30 = scmp.eq.s32.totalorder %s16, 0
      %p31 = por %p29, %p30
      %p32 = scmp.ne.s32.totalorder %s24, %s26
      %p33 = scmp.eq.s32.totalorder %s21, 1
      %p34 = por %p32, %p33
      %p35 = scmp.ne.s32.totalorder %s26, %s27
      %p36 = scmp.eq.s32.totalorder %s21, 0
      %p37 = por %p35, %p36
      %p38 = scmp.ne.s32.totalorder %s26, %s27
      %p39 = scmp.eq.s32.totalorder %s22, 1
      %p40 = por %p38, %p39
      %p42 = scmp.ne.s32.totalorder %s27, %s41
      %p43 = scmp.eq.s32.totalorder %s22, 0
      %p44 = por %p42, %p43
      %s46 = sadd.s32 %s45, 1
      %p49 = scmp.eq.s32.totalorder %s16, 1
      %p50 = scmp.ne.s32.totalorder %s45, %s47
      %p51 = scmp.eq.s32.totalorder %s16, 0
      %p52 = por %p50, %p51
      %p53 = scmp.ne.s32.totalorder %s45, %s47
      %p54 = scmp.eq.s32.totalorder %s21, 1
      %p55 = por %p53, %p54
      %p56 = scmp.ne.s32.totalorder %s47, %s48
      %p57 = scmp.eq.s32.totalorder %s21, 0
      %p58 = por %p56, %p57
      %p59 = scmp.ne.s32.totalorder %s47, %s48
      %p60 = scmp.eq.s32.totalorder %s22, 1
      %p61 = por %p59, %p60
      %p63 = scmp.ne.s32.totalorder %s48, %s62
      %p64 = scmp.eq.s32.totalorder %s22, 0
      %p65 = por %p63, %p64
      %s67 = sadd.s32 %s66, 1
      %p70 = scmp.eq.s32.totalorder %s16, 1
      %p71 = scmp.ne.s32.totalorder %s66, %s68
      %p72 = scmp.eq.s32.totalorder %s16, 0
      %p73 = por %p71, %p72
      %p74 = scmp.ne.s32.totalorder %s66, %s68
      %p75 = scmp.eq.s32.totalorder %s21, 1
      %p76 = por %p74, %p75
      %p77 = scmp.ne.s32.totalorder %s68, %s69
      %p78 = scmp.eq.s32.totalorder %s21, 0
      %p79 = por %p77, %p78
      %p80 = scmp.ne.s32.totalorder %s68, %s69
      %p81 = scmp.eq.s32.totalorder %s22, 1
      %p82 = por %p80, %p81
      %p84 = scmp.ne.s32.totalorder %s69, %s83
      %p85 = scmp.eq.s32.totalorder %s22, 0
      %p86 = por %p84, %p85
      %s87 = ssub.s32 %s16, %s23
      %p88 = scmp.eq.s32.totalorder %s87, 0
      %s90 = sadd.s32 %s89, 1
      %s91 = scalar_select %p88, %s89, %s90
      %p94 = pneg %p88
      %p95 = scmp.eq.s32.totalorder %s16, 1
      %p96 = por %p94, %p95
      %p97 = scmp.ne.s32.totalorder %s89, %s92
      %p98 = scmp.eq.s32.totalorder %s16, 0
      %p99 = por %p97, %p98
      %p100 = scmp.ne.s32.totalorder %s89, %s92
      %p101 = scmp.eq.s32.totalorder %s21, 1
      %p102 = por %p100, %p101
      %p103 = scmp.ne.s32.totalorder %s92, %s93
      %p104 = scmp.eq.s32.totalorder %s21, 0
      %p105 = por %p103, %p104
      %p106 = scmp.ne.s32.totalorder %s92, %s93
      %p107 = scmp.eq.s32.totalorder %s22, 1
      %p108 = por %p106, %p107
      %p110 = scmp.ne.s32.totalorder %s93, %s109
      %p111 = scmp.eq.s32.totalorder %s22, 0
      %p112 = por %p110, %p111
      %s113 = ssub.s32 %s16, %s23
      %p114 = scmp.eq.s32.totalorder %s113, 0
      %s116 = sadd.s32 %s115, 1
      %s117 = scalar_select %p114, %s115, %s116
      %p120 = pneg %p114
      %p121 = scmp.eq.s32.totalorder %s16, 1
      %p122 = por %p120, %p121
      %p123 = scmp.ne.s32.totalorder %s115, %s118
      %p124 = scmp.eq.s32.totalorder %s16, 0
      %p125 = por %p123, %p124
      %p126 = scmp.ne.s32.totalorder %s115, %s118
      %p127 = scmp.eq.s32.totalorder %s21, 1
      %p128 = por %p126, %p127
      %p129 = scmp.ne.s32.totalorder %s118, %s119
      %p130 = scmp.eq.s32.totalorder %s21, 0
      %p131 = por %p129, %p130
      %p132 = scmp.ne.s32.totalorder %s118, %s119
      %p133 = scmp.eq.s32.totalorder %s22, 1
      %p134 = por %p132, %p133
      %p136 = scmp.ne.s32.totalorder %s119, %s135
      %p137 = scmp.eq.s32.totalorder %s22, 0
      %p138 = por %p136, %p137
      %s139 = ssub.s32 %s16, %s23
      %p140 = scmp.eq.s32.totalorder %s139, 0
      %s142 = sadd.s32 %s141, 1
      %s143 = scalar_select %p140, %s141, %s142
      %p146 = pneg %p140
      %p147 = scmp.eq.s32.totalorder %s16, 1
      %p148 = por %p146, %p147
      %p149 = scmp.ne.s32.totalorder %s141, %s144
      %p150 = scmp.eq.s32.totalorder %s16, 0
      %p151 = por %p149, %p150
      %p152 = scmp.ne.s32.totalorder %s141, %s144
      %p153 = scmp.eq.s32.totalorder %s21, 1
      %p154 = por %p152, %p153
      %p155 = scmp.ne.s32.totalorder %s144, %s145
      %p156 = scmp.eq.s32.totalorder %s21, 0
      %p157 = por %p155, %p156
      %p158 = scmp.ne.s32.totalorder %s144, %s145
      %p159 = scmp.eq.s32.totalorder %s22, 1
      %p160 = por %p158, %p159
      %p162 = scmp.ne.s32.totalorder %s145, %s161
      %p163 = scmp.eq.s32.totalorder %s22, 0
      %p164 = por %p162, %p163
      %p165 = scmp.le.s32.totalorder 1, %s16
      %p166 = scmp.lt.s32.totalorder %s16, 3
      %p167 = pnand %p165, %p166
      %p168 = pneg %p167
      // Predicated region
      $region9: #{tpu_custom_call.1} parent=5 // pred_check
        _
      $region10: #{tpu_custom_call.1} parent=5 // pred_check_branch
        %170 = sbr.rel (%p167) target = $region12
      $region11: #{tpu_custom_call.1} parent=5 // pred_region
        %s171 = ssub.s32 %s16, 1
        // Predicated region
        $region13: #{tpu_custom_call.1} parent=11 // pred_check
          %p172 = pneg %p37
        $region14: #{tpu_custom_call.1} parent=11 // pred_check_branch
          %174 = sbr.rel (%p172) target = $region16
        $region15: #{tpu_custom_call.1} parent=11 // pred_region
          %176 = vsyncadd [#allocation3], 0
          %s177 = sshll.u32 %s0, 4
          %s178 = int_to_ptr.hbm [resolvable:$true] %s177
          %s179 = sshll.u32 [#allocation2], 4
          %s180 = int_to_ptr.vmem [resolvable:$true] %s179
          %185 = dma.hbm_to_vmem [thread:$0]  %s178, 256, %s180, [#allocation3], 128, 128, 8
        $region16: #{tpu_custom_call.1} parent=11 // pred_fallthru
          _
        // Predicated region
        $region17: #{tpu_custom_call.1} parent=11 // pred_check
          %p186 = pneg %p58
        $region18: #{tpu_custom_call.1} parent=11 // pred_check_branch
          %188 = sbr.rel (%p186) target = $region20
        $region19: #{tpu_custom_call.1} parent=11 // pred_region
          %190 = vsyncadd [#allocation6], 0
          %s191 = sshll.u32 %s1, 4
          %s192 = int_to_ptr.hbm [resolvable:$true] %s191
          %s193 = sshll.u32 [#allocation5], 4
          %s194 = int_to_ptr.vmem [resolvable:$true] %s193
          %199 = dma.hbm_to_vmem [thread:$0]  %s192, 1920, %s194, [#allocation6], 384, 384, 24
        $region20: #{tpu_custom_call.1} parent=11 // pred_fallthru
          _
        // Predicated region
        $region21: #{tpu_custom_call.1} parent=11 // pred_check
          %p200 = pneg %p79
        $region22: #{tpu_custom_call.1} parent=11 // pred_check_branch
          %202 = sbr.rel (%p200) target = $region24
        $region23: #{tpu_custom_call.1} parent=11 // pred_region
          _
        $region24: #{tpu_custom_call.1} parent=11 // pred_fallthru
          _
      $region12: #{tpu_custom_call.1} parent=5 // pred_fallthru
        _
      %p203 = scmp.lt.s32.totalorder %s16, 2
      // Predicated region
      $region25: #{tpu_custom_call.1} parent=5 // pred_check
        %p204 = pneg %p203
      $region26: #{tpu_custom_call.1} parent=5 // pred_check_branch
        %206 = sbr.rel (%p204) target = $region28
      $region27: #{tpu_custom_call.1} parent=5 // pred_region
        // Predicated region
        $region29: #{tpu_custom_call.1} parent=27 // pred_check
          %p207 = pneg %p99
        $region30: #{tpu_custom_call.1} parent=27 // pred_check_branch
          %209 = sbr.rel (%p207) target = $region32
        $region31: #{tpu_custom_call.1} parent=27 // pred_region
          %s210 = sand.u32 %s16, 1
          %s211 = scalar_lea.sflag [#allocation3], %s210
          %s212 = sand.u32 %s89, 1
          %s213 = smul.addr %s212, 16
          %s214 = scalar_lea.vmem [#allocation7], %s213
          %s215 = smul.u32 2, %s16
          %217 = vsyncadd %s211, 0
          %s218 = smul.addr %s215, 8
          %s219 = scalar_lea.hbm %s3, %s218
          %s220 = sshll.u32 %s219, 4
          %s221 = int_to_ptr.hbm [resolvable:$true] %s220
          %s222 = sshll.u32 %s214, 4
          %s223 = int_to_ptr.vmem [resolvable:$true] %s222
          %228 = dma.hbm_to_vmem [thread:$0]  %s221, 256, %s223, %s211, 128, 128, 8
        $region32: #{tpu_custom_call.1} parent=27 // pred_fallthru
          _
        // Predicated region
        $region33: #{tpu_custom_call.1} parent=27 // pred_check
          %p229 = pneg %p125
        $region34: #{tpu_custom_call.1} parent=27 // pred_check_branch
          %231 = sbr.rel (%p229) target = $region36
        $region35: #{tpu_custom_call.1} parent=27 // pred_region
          %s232 = sand.u32 %s16, 1
          %s233 = scalar_lea.sflag [#allocation3], %s232
          %s234 = sand.u32 %s115, 1
          %s235 = smul.addr %s234, 16
          %s236 = scalar_lea.vmem [#allocation8], %s235
          %s237 = smul.u32 2, %s16
          %239 = vsyncadd %s233, 0
          %s240 = smul.addr %s237, 8
          %s241 = scalar_lea.hbm %s4, %s240
          %s242 = sshll.u32 %s241, 4
          %s243 = int_to_ptr.hbm [resolvable:$true] %s242
          %s244 = sshll.u32 %s236, 4
          %s245 = int_to_ptr.vmem [resolvable:$true] %s244
          %250 = dma.hbm_to_vmem [thread:$0]  %s243, 256, %s245, %s233, 128, 128, 8
        $region36: #{tpu_custom_call.1} parent=27 // pred_fallthru
          _
      $region28: #{tpu_custom_call.1} parent=5 // pred_fallthru
        _
      %p251 = scmp.le.s32.totalorder 1, %s16
      %p252 = scmp.lt.s32.totalorder %s16, 3
      %p253 = pnand %p251, %p252
      %p254 = pneg %p253
      // Predicated region
      $region37: #{tpu_custom_call.1} parent=5 // pred_check
        _
      $region38: #{tpu_custom_call.1} parent=5 // pred_check_branch
        %256 = sbr.rel (%p253) target = $region40
      $region39: #{tpu_custom_call.1} parent=5 // pred_region
        %s257 = ssub.s32 %s16, 1
        // Predicated region
        $region41: #{tpu_custom_call.1} parent=39 // pred_check
          %p258 = pneg %p37
        $region42: #{tpu_custom_call.1} parent=39 // pred_check_branch
          %260 = sbr.rel (%p258) target = $region44
        $region43: #{tpu_custom_call.1} parent=39 // pred_region
          %262 = dma.done [#allocation3], 256
        $region44: #{tpu_custom_call.1} parent=39 // pred_fallthru
          _
        // Predicated region
        $region45: #{tpu_custom_call.1} parent=39 // pred_check
          %p263 = pneg %p58
        $region46: #{tpu_custom_call.1} parent=39 // pred_check_branch
          %265 = sbr.rel (%p263) target = $region48
        $region47: #{tpu_custom_call.1} parent=39 // pred_region
          %267 = dma.done [#allocation6], 1920
        $region48: #{tpu_custom_call.1} parent=39 // pred_fallthru
          _
        %s268 = sand.u32 %s21, 1
        %s269 = scalar_lea.sflag [#allocation3], %s268
        %s270 = sand.u32 %s92, 1
        %s271 = smul.addr %s270, 16
        %s272 = scalar_lea.vmem [#allocation7], %s271
        // Predicated region
        $region49: #{tpu_custom_call.1} parent=39 // pred_check
          %p273 = pneg %p105
        $region50: #{tpu_custom_call.1} parent=39 // pred_check_branch
          %275 = sbr.rel (%p273) target = $region52
        $region51: #{tpu_custom_call.1} parent=39 // pred_region
          %277 = dma.done %s269, 256
        $region52: #{tpu_custom_call.1} parent=39 // pred_fallthru
          _
        %s278 = sand.u32 %s21, 1
        %s279 = scalar_lea.sflag [#allocation3], %s278
        %s280 = sand.u32 %s118, 1
        %s281 = smul.addr %s280, 16
        %s282 = scalar_lea.vmem [#allocation8], %s281
        // Predicated region
        $region53: #{tpu_custom_call.1} parent=39 // pred_check
          %p283 = pneg %p131
        $region54: #{tpu_custom_call.1} parent=39 // pred_check_branch
          %285 = sbr.rel (%p283) target = $region56
        $region55: #{tpu_custom_call.1} parent=39 // pred_region
          %287 = dma.done %s279, 256
        $region56: #{tpu_custom_call.1} parent=39 // pred_fallthru
          _
        %p288 = pneg %p37
        %p289 = pneg %p34
        %p290 = pneg %p58
        %p291 = pneg %p55
        %p292 = pneg %p79
        %p293 = pneg %p76
        %s294 = sand.u32 %s21, 1
        %s295 = scalar_lea.sflag [#allocation3], %s294
        %s296 = sand.u32 %s92, 1
        %s297 = smul.addr %s296, 16
        %s298 = scalar_lea.vmem [#allocation7], %s297
        %p299 = pneg %p105
        %p300 = pneg %p102
        %s301 = sand.u32 %s21, 1
        %s302 = scalar_lea.sflag [#allocation3], %s301
        %s303 = sand.u32 %s118, 1
        %s304 = smul.addr %s303, 16
        %s305 = scalar_lea.vmem [#allocation8], %s304
        %p306 = pneg %p131
        %p307 = pneg %p128
        %p308 = pneg %p157
        %p309 = pneg %p154
        %s310 = sand.u32 %s144, 1
        %s311 = scalar_lea.sflag [#allocation4], %s310
        %s312 = sand.u32 %s144, 1
        %s313 = smul.addr %s312, 16
        %s314 = scalar_lea.vmem [#allocation9], %s313
        %s315 = smul.u32 2, %s21
        %s316 = smul.u32 2, %s21
        %s317 = smul.u32 2, %s21
        %v318 = vld [vmem:[#allocation2] sm:$0xff]
        %v319 = vld [vmem:[#allocation2 + $0x8] sm:$0xff]
        %v320 = vld [vmem:[#allocation5] sm:$0xff]
        %v321 = vld [vmem:[#allocation5 + $0x8] sm:$0xff]
        %v322 = vld [vmem:[#allocation5 + $0x10] sm:$0xff]
        %v323 = vld [vmem:[#allocation5 + $0x18] sm:$0xff]
        %v324 = vld [vmem:[#allocation5 + $0x20] sm:$0xff]
        %v325 = vld [vmem:[#allocation5 + $0x28] sm:$0xff]
        %v326 = vld [vmem:[#allocation5 + $0x30] sm:$0xff]
        %v327 = vld [vmem:[#allocation5 + $0x38] sm:$0xff]
        %v328 = vld [vmem:[#allocation5 + $0x40] sm:$0xff]
        %v329 = vld [vmem:[#allocation5 + $0x48] sm:$0xff]
        %v330 = vld [vmem:[#allocation5 + $0x50] sm:$0xff]
        %v331 = vld [vmem:[#allocation5 + $0x58] sm:$0xff]
        %v332 = vld [vmem:[#allocation5 + $0x60] sm:$0xf]
        %v333 = vld [vmem:[#allocation5 + $0x68] sm:$0xf]
        %v334 = vld [vmem:[#allocation5 + $0x70] sm:$0xf]
        %v335 = vld [vmem:[%s2] sm:$0x1]
        %v336 = vld [vmem:[%s272] sm:$0xff]
        %v337 = vld [vmem:[%s272 + $0x8] sm:$0xff]
        %vm338 = vcmask 293888
        %v340 = vsel %vm338, %v336, 0
        %v343 = vsel %vm338, %v337, 0
        %vm345 = vcmask 1043456
        %v347 = vsel %vm345, %v332, 0
        %v350 = vsel %vm345, %v333, 0
        %v353 = vsel %vm345, %v334, 0
        %355 = vmatpush.msra.mxu0 0.0
        %356 = vmatpush.msra.mxu0 0.0
        %357 = vmatpush.msra.mxu0 0.0
        %358 = vmatpush.msra.mxu0 0.0
        %359 = vmatpush.msra.mxu0 0.0
        %360 = vmatpush.msra.mxu0 0.0
        %361 = vmatpush.msra.mxu0 0.0
        %362 = vmatpush.msra.mxu0 0.0
        %363 = vmatpush.msra.mxu0 0.0
        %364 = vmatpush.msra.mxu0 0.0
        %365 = vmatpush.msra.mxu0 0.0
        %366 = vmatpush.msra.mxu0 %v347
        %367 = vmatpush.msra.mxu0 %v329
        %368 = vmatpush.msra.mxu0 %v326
        %369 = vmatpush.msra.mxu0 %v323
        %370 = vmatpush.msra.mxu0 %v320
        %371 = vmatmul.f32.gmra.mxu0 %v340
        %v372 = vpop.f32.mrf.mxu0
        %v373 = vadd.f32 0.0, %v372
        %374 = vmatmul.f32.gmra.mxu0 %v343
        %v375 = vpop.f32.mrf.mxu0
        %v376 = vadd.f32 0.0, %v375
        %377 = vdwg.mxu0
        %378 = vmatpush.msra.mxu0 0.0
        %379 = vmatpush.msra.mxu0 0.0
        %380 = vmatpush.msra.mxu0 0.0
        %381 = vmatpush.msra.mxu0 0.0
        %382 = vmatpush.msra.mxu0 0.0
        %383 = vmatpush.msra.mxu0 0.0
        %384 = vmatpush.msra.mxu0 0.0
        %385 = vmatpush.msra.mxu0 0.0
        %386 = vmatpush.msra.mxu0 0.0
        %387 = vmatpush.msra.mxu0 0.0
        %388 = vmatpush.msra.mxu0 0.0
        %389 = vmatpush.msra.mxu0 %v350
        %390 = vmatpush.msra.mxu0 %v330
        %391 = vmatpush.msra.mxu0 %v327
        %392 = vmatpush.msra.mxu0 %v324
        %393 = vmatpush.msra.mxu0 %v321
        %394 = vmatmul.f32.gmra.mxu0 %v340
        %v395 = vpop.f32.mrf.mxu0
        %v396 = vadd.f32 0.0, %v395
        %397 = vmatmul.f32.gmra.mxu0 %v343
        %v398 = vpop.f32.mrf.mxu0
        %v399 = vadd.f32 0.0, %v398
        %400 = vdwg.mxu0
        %401 = vmatpush.msra.mxu0 0.0
        %402 = vmatpush.msra.mxu0 0.0
        %403 = vmatpush.msra.mxu0 0.0
        %404 = vmatpush.msra.mxu0 0.0
        %405 = vmatpush.msra.mxu0 0.0
        %406 = vmatpush.msra.mxu0 0.0
        %407 = vmatpush.msra.mxu0 0.0
        %408 = vmatpush.msra.mxu0 0.0
        %409 = vmatpush.msra.mxu0 0.0
        %410 = vmatpush.msra.mxu0 0.0
        %411 = vmatpush.msra.mxu0 0.0
        %412 = vmatpush.msra.mxu0 %v353
        %413 = vmatpush.msra.mxu0 %v331
        %414 = vmatpush.msra.mxu0 %v328
        %415 = vmatpush.msra.mxu0 %v325
        %416 = vmatpush.msra.mxu0 %v322
        %417 = vmatmul.f32.gmra.mxu0 %v340
        %v418 = vpop.f32.mrf.mxu0
        %v419 = vadd.f32 0.0, %v418
        %420 = vmatmul.f32.gmra.mxu0 %v343
        %v421 = vpop.f32.mrf.mxu0
        %v422 = vadd.f32 0.0, %v421
        %423 = vdwg.mxu0
        %vm424 = vcmask 1040384
        %v425 = vsel %vm424, %v373, 0.0
        %v426 = vrot.slane %v396, 7
        %vm427 = vcmask 1041409
        %v428 = vsel %vm427, %v426, %v425
        %v429 = vrot.slane %v419, 6
        %vm430 = vcmask 1042434
        %v431 = vsel %vm430, %v429, %v428
        %v432 = vrot.slane %v373, 6
        %vm433 = vcmask 1043459
        %v434 = vsel %vm433, %v432, %v431
        %v435 = vrot.slane %v396, 5
        %vm436 = vcmask 1044484
        %v437 = vsel %vm436, %v435, %v434
        %v438 = vrot.slane %v419, 4
        %vm439 = vcmask 1045509
        %v440 = vsel %vm439, %v438, %v437
        %v441 = vrot.slane %v373, 4
        %vm442 = vcmask 1046534
        %v443 = vsel %vm442, %v441, %v440
        %v444 = vrot.slane %v396, 3
        %vm445 = vcmask 1047559
        %v446 = vsel %vm445, %v444, %v443
        %v447 = vrot.slane %v419, 2
        %v448 = vsel %vm424, %v447, 0.0
        %v449 = vrot.slane %v373, 2
        %v450 = vsel %vm427, %v449, %v448
        %v451 = vrot.slane %v396, 1
        %v452 = vsel %vm430, %v451, %v450
        %v453 = vsel %vm433, %v419, %v452
        %v454 = vsel %vm436, %v373, %v453
        %v455 = vsel %vm439, %v426, %v454
        %v456 = vsel %vm442, %v429, %v455
        %v457 = vsel %vm445, %v432, %v456
        %v458 = vsel %vm424, %v435, 0.0
        %v459 = vsel %vm427, %v438, %v458
        %v460 = vsel %vm430, %v441, %v459
        %v461 = vsel %vm433, %v444, %v460
        %v462 = vsel %vm436, %v447, %v461
        %v463 = vsel %vm439, %v449, %v462
        %v464 = vsel %vm442, %v451, %v463
        %v465 = vsel %vm445, %v419, %v464
        %v466 = vsel %vm424, %v376, 0.0
        %v467 = vrot.slane %v399, 7
        %v468 = vsel %vm427, %v467, %v466
        %v469 = vrot.slane %v422, 6
        %v470 = vsel %vm430, %v469, %v468
        %v471 = vrot.slane %v376, 6
        %v472 = vsel %vm433, %v471, %v470
        %v473 = vrot.slane %v399, 5
        %v474 = vsel %vm436, %v473, %v472
        %v475 = vrot.slane %v422, 4
        %v476 = vsel %vm439, %v475, %v474
        %v477 = vrot.slane %v376, 4
        %v478 = vsel %vm442, %v477, %v476
        %v479 = vrot.slane %v399, 3
        %v480 = vsel %vm445, %v479, %v478
        %v481 = vrot.slane %v422, 2
        %v482 = vsel %vm424, %v481, 0.0
        %v483 = vrot.slane %v376, 2
        %v484 = vsel %vm427, %v483, %v482
        %v485 = vrot.slane %v399, 1
        %v486 = vsel %vm430, %v485, %v484
        %v487 = vsel %vm433, %v422, %v486
        %v488 = vsel %vm436, %v376, %v487
        %v489 = vsel %vm439, %v467, %v488
        %v490 = vsel %vm442, %v469, %v489
        %v491 = vsel %vm445, %v471, %v490
        %v492 = vsel %vm424, %v473, 0.0
        %v493 = vsel %vm427, %v475, %v492
        %v494 = vsel %vm430, %v477, %v493
        %v495 = vsel %vm433, %v479, %v494
        %v496 = vsel %vm436, %v481, %v495
        %v497 = vsel %vm439, %v483, %v496
        %v498 = vsel %vm442, %v485, %v497
        %v499 = vsel %vm445, %v422, %v498
        %v501 = vperm.slane %v335, 0
        %vm503 = vcmask 392192
        %v505 = vsel %vm503, %v318, 0
        %v508 = vsel %vm503, %v319, 0
        %510 = vmatpush.msra.mxu0 0.0
        %511 = vmatpush.msra.mxu0 0.0
        %512 = vmatpush.msra.mxu0 0.0
        %513 = vmatpush.msra.mxu0 0.0
        %514 = vmatpush.msra.mxu0 0.0
        %515 = vmatpush.msra.mxu0 0.0
        %516 = vmatpush.msra.mxu0 0.0
        %517 = vmatpush.msra.mxu0 0.0
        %518 = vmatpush.msra.mxu0 0.0
        %519 = vmatpush.msra.mxu0 0.0
        %520 = vmatpush.msra.mxu0 %v499
        %521 = vmatpush.msra.mxu0 %v491
        %522 = vmatpush.msra.mxu0 %v480
        %523 = vmatpush.msra.mxu0 %v465
        %524 = vmatpush.msra.mxu0 %v457
        %525 = vmatpush.msra.mxu0 %v446
        %526 = vmatmul.f32.gmra.mxu0 %v505
        %v527 = vpop.f32.mrf.mxu0
        %v528 = vadd.f32 %v501, %v527
        %529 = vmatmul.f32.gmra.mxu0 %v508
        %v530 = vpop.f32.mrf.mxu0
        %v531 = vadd.f32 %v501, %v530
        %532 = vdwg.mxu0
        %v533 = vxor.u32 %v528, 2147483648
        %v534 = vxor.u32 %v531, 2147483648
        %v535 = vmul.f32 %v533, 1.442695
        %v536 = vpow.pop %v535
        %v537 = vmul.f32 %v534, 1.442695
        %v538 = vpow.pop %v537
        %v539 = vadd.f32 %v536, 1.0
        %v540 = vadd.f32 %v538, 1.0
        %v541 = vrcp.pop %v539
        %v542 = vmul.f32 %v539, %v541
        %v543 = vsub.f32 1.0, %v542
        %v544 = vmul.f32 %v541, %v543
        %v545 = vadd.f32 %v541, %v544
        %vm546 = vweird.f32 %v539
        %vm547 = vweird.f32 %v541
        %vm548 = vmor %vm546, %vm547
        %v549 = vsel %vm548, %v541, %v545
        %v550 = vand.u32 2147483647, %v539
        %vm551 = vcmp.eq.f32.partialorder %v550, 8.507059e+37
        %v552 = vand.u32 %v539, 2147483648
        %v553 = vor.u32 1.1754944e-38, %v552
        %v554 = vsel %vm551, %v553, %v549
        %v555 = vmul.f32 1.0, %v554
        %v556 = vrcp.pop %v540
        %v557 = vmul.f32 %v540, %v556
        %v558 = vsub.f32 1.0, %v557
        %v559 = vmul.f32 %v556, %v558
        %v560 = vadd.f32 %v556, %v559
        %vm561 = vweird.f32 %v540
        %vm562 = vweird.f32 %v556
        %vm563 = vmor %vm561, %vm562
        %v564 = vsel %vm563, %v556, %v560
        %v565 = vand.u32 2147483647, %v540
        %vm566 = vcmp.eq.f32.partialorder %v565, 8.507059e+37
        %v567 = vand.u32 %v540, 2147483648
        %v568 = vor.u32 1.1754944e-38, %v567
        %v569 = vsel %vm566, %v568, %v564
        %v570 = vmul.f32 1.0, %v569
        %v571 = vmul.f32 %v555, 2.0
        %v572 = vmul.f32 %v570, 2.0
        %v573 = vsub.f32 %v571, 1.0
        %v574 = vsub.f32 %v572, 1.0
        %v575 = vld [vmem:[%s282] sm:$0xff]
        %v576 = vld [vmem:[%s282 + $0x8] sm:$0xff]
        %579 = vrot.lane.b32.xlu0 %v575, 32
        %v580 = vpop.permute.xlu0 %579
        %581 = vrot.lane.b32.xlu0 %v576, 32
        %v582 = vpop.permute.xlu0 %581
        %v585 = vmul.f32 %v555, %v580
        %v586 = vmul.f32 %v570, %v582
        %589 = vrot.lane.b32.xlu0 %v573, 32
        %v590 = vpop.permute.xlu0 %589
        %591 = vrot.lane.b32.xlu0 %v574, 32
        %v592 = vpop.permute.xlu0 %591
        %v595 = vmul.f32 %v555, %v590
        %v596 = vmul.f32 %v570, %v592
        %599 = vrot.lane.b32.xlu0 %v595, 32
        %v600 = vpop.permute.xlu0 %599
        %601 = vrot.lane.b32.xlu0 %v596, 32
        %v602 = vpop.permute.xlu0 %601
        %v605 = vadd.f32 %v585, %v600
        %v606 = vadd.f32 %v586, %v602
        %v607 = vtanh.pop %v605
        %v608 = vtanh.pop %v606
        %611 = vrot.lane.b32.xlu0 %v607, 32
        %v612 = vpop.permute.xlu0 %611
        %613 = vrot.lane.b32.xlu0 %v608, 32
        %v614 = vpop.permute.xlu0 %613
        %v617 = vmul.f32 %v555, %v612
        %v618 = vmul.f32 %v570, %v614
        %621 = vrot.lane.b32.xlu0 %v617, 64
        %v622 = vpop.permute.xlu0 %621
        %623 = vrot.lane.b32.xlu0 %v618, 64
        %v624 = vpop.permute.xlu0 %623
        %vm627 = vcmask 261120
        %v628 = vsel %vm627, %v622, %v605
        %v629 = vsel %vm627, %v624, %v606
        %vm630 = vcmask 523264
        %631 = vst.msk [vmem:[%s314] sm:$0xff] %vm630, %v628
        %632 = vst.msk [vmem:[%s314 + $0x8] sm:$0xff] %vm630, %v629
        %s633 = sand.u32 %s144, 1
        %s634 = scalar_lea.sflag [#allocation4], %s633
        %s635 = sand.u32 %s144, 1
        %s636 = smul.addr %s635, 16
        %s637 = scalar_lea.vmem [#allocation9], %s636
        // Predicated region
        $region57: #{tpu_custom_call.1} parent=39 // pred_check
          %p638 = pneg %p154
        $region58: #{tpu_custom_call.1} parent=39 // pred_check_branch
          %640 = sbr.rel (%p638) target = $region60
        $region59: #{tpu_custom_call.1} parent=39 // pred_region
          %s641 = smul.u32 2, %s21
          %643 = vsyncadd %s634, 0
          %s644 = smul.addr %s641, 8
          %s645 = scalar_lea.hbm %s5, %s644
          %s646 = sshll.u32 %s637, 4
          %s647 = int_to_ptr.vmem [resolvable:$true] %s646
          %s648 = sshll.u32 %s645, 4
          %s649 = int_to_ptr.hbm [resolvable:$true] %s648
          %654 = dma.vmem_to_hbm [thread:$0]  %s647, 256, %s649, %s634, 128, 128, 8
        $region60: #{tpu_custom_call.1} parent=39 // pred_fallthru
          _
      $region40: #{tpu_custom_call.1} parent=5 // pred_fallthru
        _
      %p655 = scmp.le.s32.totalorder 2, %s16
      // Predicated region
      $region61: #{tpu_custom_call.1} parent=5 // pred_check
        %p656 = pneg %p655
      $region62: #{tpu_custom_call.1} parent=5 // pred_check_branch
        %658 = sbr.rel (%p656) target = $region64
      $region63: #{tpu_custom_call.1} parent=5 // pred_region
        %s659 = ssub.s32 %s16, 2
        // Predicated region
        $region65: #{tpu_custom_call.1} parent=63 // pred_check
          %p660 = pneg %p160
        $region66: #{tpu_custom_call.1} parent=63 // pred_check_branch
          %662 = sbr.rel (%p660) target = $region68
        $region67: #{tpu_custom_call.1} parent=63 // pred_region
          %s663 = sand.u32 %s145, 1
          %s664 = scalar_lea.sflag [#allocation4], %s663
          %s665 = sand.u32 %s145, 1
          %s666 = smul.addr %s665, 16
          %s667 = scalar_lea.vmem [#allocation9], %s666
          %669 = dma.done %s664, 256
        $region68: #{tpu_custom_call.1} parent=63 // pred_fallthru
          _
      $region64: #{tpu_custom_call.1} parent=5 // pred_fallthru
        _
    $region6: #{tpu_custom_call.1} parent=1 // loop_footer
      %s20 = sadd.s32 1, %s16
    $region7: #{tpu_custom_call.1} parent=1 // loop_footer_branch
      %15 = sbr.rel target = $region3
    $region8: #{tpu_custom_call.1} parent=1 // loop_exit
      _
    %670 = vsyncpa [#allocation3], 1
    %s671 = scalar_lea.sflag [#allocation3], 1
    %672 = vsyncpa %s671, 1
    %673 = vsyncpa [#allocation6], 1
    %674 = vsyncpa [#allocation4], 1
    %s675 = scalar_lea.sflag [#allocation4], 1
    %676 = vsyncpa %s675, 1

</llo_original>
